<compile_context>
chip_gen: v7x
topology: tpu7x:2x2x1
jax: 0.10.0
libtpu: 0.0.40
codegen_flags: <defaults>
</compile_context>

<pallas_src>
import jax
import jax.numpy as jnp
import numpy as np
from jax import lax
from jax.experimental import pallas as pl
from jax.experimental.pallas import tpu as pltpu


def _round_up(x, m):
    return (x + m - 1) // m * m


# ------------------------------ kernel bodies ------------------------------ #

def _gather_rows(idx_ref, table_ref, dst_ref, base, tn):
    """dst[r, :] = table[idx[base + r], :] for r in [0, tn)."""
    def body(r, carry):
        t = idx_ref[base + r]                              # scalar id from SMEM
        dst_ref[pl.ds(r, 1), :] = table_ref[pl.ds(t, 1), :]
        return carry
    lax.fori_loop(0, tn, body, 0)


def _ce_rows(rows, tgt, base, tn, v_pad, v_real, n_real):
    """Max-stabilized per-row NLL over a (TN, V_pad) tile; 0 for padded rows."""
    col = lax.broadcasted_iota(jnp.int32, (tn, v_pad), 1)
    if v_pad != v_real:                                    # mask padded lanes
        rows = jnp.where(col < v_real, rows, jnp.float32(-1e30))
    m = jnp.max(rows, axis=-1, keepdims=True)                              # (TN,1)
    lse = jnp.log(jnp.sum(jnp.exp(rows - m), axis=-1, keepdims=True)) + m  # (TN,1)
    tgt_logit = jnp.sum(jnp.where(col == tgt, rows, 0.0),
                        axis=-1, keepdims=True)                            # (TN,1)
    row_id = base + lax.broadcasted_iota(jnp.int32, (tn, 1), 0)
    valid = row_id < n_real                                # padded rows contribute 0
    return jnp.where(valid, lse - tgt_logit, 0.0)


def _make_gather_kernel(tn):
    def kernel(idx_ref, table_ref, logits_ref):
        base = pl.program_id(0) * tn
        _gather_rows(idx_ref, table_ref, logits_ref, base, tn)
    return kernel


def _make_gather_ce_kernel(tn, v_pad, v_real, n_real):
    def kernel(idx_ref, tgt_ref, table_ref, logits_ref, nll_ref):
        base = pl.program_id(0) * tn
        _gather_rows(idx_ref, table_ref, logits_ref, base, tn)
        rows = logits_ref[...]                             # (TN, V_pad) f32
        tgt = tgt_ref[...]                                 # (TN, 1) int32
        nll_ref[...] = _ce_rows(rows, tgt, base, tn, v_pad, v_real, n_real)
    return kernel


def _make_loss_only_kernel(tn, v_pad, v_real, n_real):
    def kernel(idx_ref, tgt_ref, table_ref, nll_ref, rows_ref):
        base = pl.program_id(0) * tn
        _gather_rows(idx_ref, table_ref, rows_ref, base, tn)
        rows = rows_ref[...]                               # (TN, V_pad) f32 scratch
        tgt = tgt_ref[...]
        nll_ref[...] = _ce_rows(rows, tgt, base, tn, v_pad, v_real, n_real)
    return kernel


# -------------------------- padding / prep helpers -------------------------- #

def _prep(idx, table, targets=None):
    B, T = idx.shape
    V_rows, V = table.shape
    N = B * T

    v_pad = _round_up(V, 128)                              # lane-dense columns
    v_rows_pad = _round_up(V_rows, 8)                      # sublane-aligned rows
    tn = min(256, _round_up(N, 8))                         # rows per grid step
    n_pad = _round_up(N, tn)

    table_p = table.astype(jnp.float32)
    if (v_rows_pad, v_pad) != (V_rows, V):
        table_p = jnp.pad(table_p, ((0, v_rows_pad - V_rows), (0, v_pad - V)))

    # Clamp ids into range (PyTorch nn.Embedding would raise on OOB ids).
    idx_flat = jnp.clip(idx.reshape(N).astype(jnp.int32), 0, V_rows - 1)
    idx_p = jnp.pad(idx_flat, (0, n_pad - N))

    tgt_p = None
    if targets is not None:
        tgt_flat = jnp.clip(targets.reshape(N).astype(jnp.int32), 0, V - 1)
        tgt_p = jnp.pad(tgt_flat, (0, n_pad - N)).reshape(n_pad, 1)

    dims = dict(B=B, T=T, V=V, N=N, tn=tn, n_pad=n_pad, v_pad=v_pad)
    return idx_p, tgt_p, table_p, dims


_COMPILER_PARAMS = pltpu.CompilerParams(dimension_semantics=("parallel",))


# ---------------------------- pallas_call wrappers -------------------------- #

@jax.jit
def _forward_infer(idx, table):
    idx_p, _, table_p, d = _prep(idx, table)
    tn, n_pad, v_pad = d["tn"], d["n_pad"], d["v_pad"]
    logits_p = pl.pallas_call(
        _make_gather_kernel(tn),
        out_shape=jax.ShapeDtypeStruct((n_pad, v_pad), jnp.float32),
        grid_spec=pltpu.PrefetchScalarGridSpec(
            num_scalar_prefetch=1,
            grid=(n_pad // tn,),
            in_specs=[pl.BlockSpec(table_p.shape, lambda i, idx_ref: (0, 0))],
            out_specs=pl.BlockSpec((tn, v_pad), lambda i, idx_ref: (i, 0)),
        ),
        compiler_params=_COMPILER_PARAMS,
    )(idx_p, table_p)
    logits = logits_p[: d["N"], : d["V"]].reshape(d["B"], d["T"], d["V"])
    return logits


@jax.jit
def _forward_train(idx, targets, table):
    idx_p, tgt_p, table_p, d = _prep(idx, table, targets)
    tn, n_pad, v_pad, V, N = d["tn"], d["n_pad"], d["v_pad"], d["V"], d["N"]
    logits_p, nll_p = pl.pallas_call(
        _make_gather_ce_kernel(tn, v_pad, V, N),
        out_shape=(
            jax.ShapeDtypeStruct((n_pad, v_pad), jnp.float32),
            jax.ShapeDtypeStruct((n_pad, 1), jnp.float32),
        ),
        grid_spec=pltpu.PrefetchScalarGridSpec(
            num_scalar_prefetch=1,
            grid=(n_pad // tn,),
            in_specs=[
                pl.BlockSpec((tn, 1), lambda i, idx_ref: (i, 0)),        # targets
                pl.BlockSpec(table_p.shape, lambda i, idx_ref: (0, 0)),  # resident table
            ],
            out_specs=(
                pl.BlockSpec((tn, v_pad), lambda i, idx_ref: (i, 0)),
                pl.BlockSpec((tn, 1), lambda i, idx_ref: (i, 0)),
            ),
        ),
        compiler_params=_COMPILER_PARAMS,
    )(idx_p, tgt_p, table_p)
    loss = jnp.sum(nll_p) / N                              # padded rows contribute 0
    logits = logits_p[:N, :V]                              # (B*T, V), like the module
    return logits, loss


@jax.jit
def _loss_only(idx, targets, table):
    idx_p, tgt_p, table_p, d = _prep(idx, table, targets)
    tn, n_pad, v_pad, V, N = d["tn"], d["n_pad"], d["v_pad"], d["V"], d["N"]
    nll_p = pl.pallas_call(
        _make_loss_only_kernel(tn, v_pad, V, N),
        out_shape=jax.ShapeDtypeStruct((n_pad, 1), jnp.float32),
        grid_spec=pltpu.PrefetchScalarGridSpec(
            num_scalar_prefetch=1,
            grid=(n_pad // tn,),
            in_specs=[
                pl.BlockSpec((tn, 1), lambda i, idx_ref: (i, 0)),
                pl.BlockSpec(table_p.shape, lambda i, idx_ref: (0, 0)),
            ],
            out_specs=pl.BlockSpec((tn, 1), lambda i, idx_ref: (i, 0)),
            scratch_shapes=[pltpu.VMEM((tn, v_pad), jnp.float32)],
        ),
        compiler_params=_COMPILER_PARAMS,
    )(idx_p, tgt_p, table_p)
    return jnp.sum(nll_p) / N


# -------------------------------- module API -------------------------------- #

def bigram_forward(idx, table, targets=None):
    """Mirrors BigramLanguageModel.forward.

    Returns (logits, loss): logits is (B, T, V) when targets is None,
    otherwise (B*T, V) (as in the PyTorch module); loss is None or a scalar.
    """
    if targets is None:
        return _forward_infer(idx, table), None
    return _forward_train(idx, targets, table)


def bigram_loss(idx, table, targets):
    """Loss-only path: skips the (N, V) logits HBM writeback entirely."""
    return _loss_only(idx, targets, table)


# ----------------------------------- main ----------------------------------- #

if __name__ == "__main__":
    def _check(V, B, T, seed):
        key = jax.random.PRNGKey(seed)
        k_tab, k_idx, k_tgt = jax.random.split(key, 3)
        # nn.Embedding(vocab_size, vocab_size) default init ~ N(0, 1).
        table = jax.random.normal(k_tab, (V, V), dtype=jnp.float32)
        idx = jax.random.randint(k_idx, (B, T), 0, V, dtype=jnp.int32)
        targets = jax.random.randint(k_tgt, (B, T), 0, V, dtype=jnp.int32)

        # Pure-JAX reference.
        ref_logits = table[idx.reshape(-1)]                          # (B*T, V)
        ref_logp = jax.nn.log_softmax(ref_logits, axis=-1)
        ref_loss = -jnp.mean(ref_logp[jnp.arange(B * T), targets.reshape(-1)])

        # Training path (fused gather + CE, flattened logits).
        logits, loss = bigram_forward(idx, table, targets)
        logits, loss = jax.block_until_ready((logits, loss))
        np.testing.assert_allclose(np.asarray(logits), np.asarray(ref_logits),
                                   rtol=1e-5, atol=1e-5)
        np.testing.assert_allclose(float(loss), float(ref_loss),
                                   rtol=1e-5, atol=1e-5)

        # Inference path (targets=None): (B, T, V) logits, no CE math.
        logits_bt, none_loss = bigram_forward(idx, table, None)
        logits_bt = jax.block_until_ready(logits_bt)
        assert none_loss is None and logits_bt.shape == (B, T, V)
        np.testing.assert_allclose(np.asarray(logits_bt.reshape(B * T, V)),
                                   np.asarray(ref_logits), rtol=1e-5, atol=1e-5)

        # Loss-only path (no logits writeback).
        loss2 = jax.block_until_ready(bigram_loss(idx, table, targets))
        np.testing.assert_allclose(float(loss2), float(ref_loss),
                                   rtol=1e-5, atol=1e-5)

    _check(V=128, B=2, T=8, seed=0)   # lane-aligned vocab
    _check(V=65, B=2, T=8, seed=1)    # classic bigram vocab -> exercises V padding

    # TODO(synk): generate() (torch.multinomial autoregressive sampling loop)
    # is not part of forward() and is not implemented here.
    print("KERNEL_OK")
</pallas_src>

<mosaic_0001>
module attributes {stable_mosaic.version = 11 : i64} {
  func.func @kernel(%arg0: i32, %arg1: memref<16xi32, #tpu.memory_space<smem>>, %arg2: memref<16x1xi32, #tpu.memory_space<vmem>>, %arg3: memref<128x128xf32, #tpu.memory_space<vmem>>, %arg4: memref<16x128xf32, #tpu.memory_space<vmem>>, %arg5: memref<16x1xf32, #tpu.memory_space<vmem>>) attributes {dimension_semantics = [#tpu.dimension_semantics<parallel>], iteration_bounds = array<i64: 1>, scalar_prefetch = 1 : i64, scratch_operands = 0 : i64, tpu.core_type = #tpu.core_type<tc>, window_params = [{transform_indices = @transform_0, window_bounds = array<i64: 16, 1>}, {pipeline_mode = #tpu.pipeline_mode<synchronous>, transform_indices = @transform_1, window_bounds = array<i64: 128, 128>}, {transform_indices = @transform_2, window_bounds = array<i64: 16, 128>}, {transform_indices = @transform_3, window_bounds = array<i64: 16, 1>}]} {
    %c16_i32 = arith.constant 16 : i32
    %0 = arith.muli %arg0, %c16_i32 : i32
    %c0_i32 = arith.constant 0 : i32
    %c16_i32_0 = arith.constant 16 : i32
    %1 = arith.addi %c0_i32, %c16_i32_0 : i32
    %c1_i32 = arith.constant 1 : i32
    scf.for %arg6 = %c0_i32 to %1 step %c1_i32  : i32 {
      %29 = arith.addi %0, %arg6 : i32
      %30 = arith.index_cast %29 : i32 to index
      %31 = memref.load %arg1[%30] : memref<16xi32, #tpu.memory_space<smem>>
      %32 = arith.index_cast %31 : i32 to index
      %c0_12 = arith.constant 0 : index
      %33 = vector.load %arg3[%32, %c0_12] : memref<128x128xf32, #tpu.memory_space<vmem>>, vector<1x128xf32>
      %34 = arith.index_cast %arg6 : i32 to index
      %c0_13 = arith.constant 0 : index
      %35 = vector.load %arg4[%34, %c0_13] : memref<16x128xf32, #tpu.memory_space<vmem>>, vector<1x128xf32>
      tpu.vector_store %arg4[%34, %c0_13], %33 {strides = array<i32>} : memref<16x128xf32, #tpu.memory_space<vmem>>, vector<1x128xf32>,
    }
    %c16_i32_1 = arith.constant 16 : i32
    %c0 = arith.constant 0 : index
    %c0_2 = arith.constant 0 : index
    %2 = vector.load %arg4[%c0, %c0_2] : memref<16x128xf32, #tpu.memory_space<vmem>>, vector<16x128xf32>
    %c0_3 = arith.constant 0 : index
    %c0_4 = arith.constant 0 : index
    %3 = vector.load %arg2[%c0_3, %c0_4] : memref<16x1xi32, #tpu.memory_space<vmem>>, vector<16x1xi32>
    %4 = tpu.iota {dimensions = array<i32: 1>} : vector<16x128xi32>
    %cst = arith.constant dense<0xFF800000> : vector<16xf32>
    %5 = vector.multi_reduction <maximumf>, %2, %cst [1] : vector<16x128xf32> to vector<16xf32>
    %6 = vector.shape_cast %5 : vector<16xf32> to vector<16x1xf32>
    %7 = vector.broadcast %6 : vector<16x1xf32> to vector<16x128xf32>
    %8 = arith.subf %2, %7 : vector<16x128xf32>
    %9 = math.exp %8 : vector<16x128xf32>
    %cst_5 = arith.constant dense<0.000000e+00> : vector<16xf32>
    %10 = vector.multi_reduction <add>, %9, %cst_5 [1] : vector<16x128xf32> to vector<16xf32>
    %11 = vector.shape_cast %10 : vector<16xf32> to vector<16x1xf32>
    %12 = math.log %11 : vector<16x1xf32>
    %13 = arith.addf %12, %6 : vector<16x1xf32>
    %14 = vector.broadcast %3 : vector<16x1xi32> to vector<16x128xi32>
    %15 = arith.cmpi eq, %4, %14 : vector<16x128xi32>
    %cst_6 = arith.constant 0.000000e+00 : f32
    %16 = vector.broadcast %cst_6 : f32 to vector<16x128xf32>
    %17 = arith.select %15, %2, %16 : vector<16x128xi1>, vector<16x128xf32>
    %cst_7 = arith.constant dense<0.000000e+00> : vector<16xf32>
    %18 = vector.multi_reduction <add>, %17, %cst_7 [1] : vector<16x128xf32> to vector<16xf32>
    %19 = vector.shape_cast %18 : vector<16xf32> to vector<16x1xf32>
    %20 = tpu.iota {dimensions = array<i32: 0>} : vector<16x1xi32>
    %21 = vector.broadcast %0 : i32 to vector<16x1xi32>
    %22 = arith.addi %21, %20 : vector<16x1xi32>
    %c16_i32_8 = arith.constant 16 : i32
    %23 = vector.broadcast %c16_i32_8 : i32 to vector<16x1xi32>
    %24 = arith.cmpi slt, %22, %23 : vector<16x1xi32>
    %25 = arith.subf %13, %19 : vector<16x1xf32>
    %cst_9 = arith.constant 0.000000e+00 : f32
    %26 = vector.broadcast %cst_9 : f32 to vector<16x1xf32>
    %27 = arith.select %24, %25, %26 : vector<16x1xi1>, vector<16x1xf32>
    %c0_10 = arith.constant 0 : index
    %c0_11 = arith.constant 0 : index
    %28 = vector.load %arg5[%c0_10, %c0_11] : memref<16x1xf32, #tpu.memory_space<vmem>>, vector<16x1xf32>
    tpu.vector_store %arg5[%c0_10, %c0_11], %27 {strides = array<i32>} : memref<16x1xf32, #tpu.memory_space<vmem>>, vector<16x1xf32>,
    return
  }
  func.func @transform_0(%arg0: i32, %arg1: memref<16xi32, #tpu.memory_space<smem>>) -> (i32, i32) {
    %c0_i32 = arith.constant 0 : i32
    %c0_i32_0 = arith.constant 0 : i32
    return %arg0, %c0_i32 : i32, i32
  }
  func.func @transform_1(%arg0: i32, %arg1: memref<16xi32, #tpu.memory_space<smem>>) -> (i32, i32) {
    %c0_i32 = arith.constant 0 : i32
    %c0_i32_0 = arith.constant 0 : i32
    %c0_i32_1 = arith.constant 0 : i32
    return %c0_i32, %c0_i32_0 : i32, i32
  }
  func.func @transform_2(%arg0: i32, %arg1: memref<16xi32, #tpu.memory_space<smem>>) -> (i32, i32) {
    %c0_i32 = arith.constant 0 : i32
    %c0_i32_0 = arith.constant 0 : i32
    return %arg0, %c0_i32 : i32, i32
  }
  func.func @transform_3(%arg0: i32, %arg1: memref<16xi32, #tpu.memory_space<smem>>) -> (i32, i32) {
    %c0_i32 = arith.constant 0 : i32
    %c0_i32_0 = arith.constant 0 : i32
    return %arg0, %c0_i32 : i32, i32
  }
}

</mosaic_0001>

<llo_original>
// kernel: _forward_train.1
$region0: #{_forward_train.1}
  #allocation0 [shape = 'u32[]', space=smem, size = 0x4, offset = 0x4, fixed_abs, tag = 'smem constant byte address 0x4 - core index']
  #allocation1 [shape = 'u32[144,128]{1,0:T(1,128)}', space=vmem, size = 0x12000, scoped, tag = 'internal scratch']
  #allocation2 [shape = 's32[1]{0}', space=sflag, size = 0x4, scoped, tag = 'scoped memory for _forward_train.1']
  #allocation3 [shape = 'u8[512]{0}', space=smem, size = 0x200, scoped, tag = 'prefetched SMEM operand 0']
  %s0 = inlined_call_operand.vmem [shape: s32[16], index: 0, kind: input, shape index: {}]
  %s1 = inlined_call_operand.vmem [shape: s32[16,1], index: 1, kind: input, shape index: {}]
  %s2 = inlined_call_operand.hbm [shape: f32[128,128], index: 2, kind: input, shape index: {}]
  %s3 = inlined_call_operand.hbm [shape: f32[16,128], index: 3, kind: output, shape index: {0}]
  %s4 = inlined_call_operand.vmem [shape: f32[16,1], index: 4, kind: output, shape index: {1}]
  %5 = xla_tuple %s3, %s4
  %s6 = sld [smem:[#allocation0]]
  $region37: #{_forward_train.1} parent=0
    _
  %s8 = ssub.s32 1, %s6
  %s9 = scalar_select 0, %s8, %s6
  %s10 = sshll.u32 %s0, 4
  %s11 = int_to_ptr.vmem [resolvable:$true] %s10
  %13 = dma.vmem_to_smem %s11, 16, [#allocation3], [#allocation2]
  %14 = dma.done [#allocation2], 16
  %15 = sfence
  $region1: #{_forward_train.1} parent=0
    #allocation4 [shape = 'u8[65536]{0}', space=vmem, size = 0x10000, scoped, tag = 'input window, operand 2, single buffered']
    #allocation5 [shape = 's32[1]{0}', space=sflag, size = 0x4, scoped, tag = 'scoped memory for _forward_train.1']
    #allocation6 [shape = 's32[1]{0}', space=sflag, size = 0x4, scoped, tag = 'scoped memory for _forward_train.1']
    #allocation7 [shape = 'u8[8192]{0}', space=vmem, size = 0x2000, scoped, tag = 'output window, operand 0, single buffered']
    %16 = vsyncpa [#allocation5], 0
    %17 = vsyncpa [#allocation6], 0
    // Predicated region
    $region2: #{_forward_train.1} parent=1 // pred_check
      _
    $region3: #{_forward_train.1} parent=1 // pred_check_branch
      %19 = sbr.rel (0) target = $region5
    $region4: #{_forward_train.1} parent=1 // pred_region
      _
    $region5: #{_forward_train.1} parent=1 // pred_fallthru
      _
    // Predicated region
    $region6: #{_forward_train.1} parent=1 // pred_check
      _
    $region7: #{_forward_train.1} parent=1 // pred_check_branch
      %21 = sbr.rel (0) target = $region9
    $region8: #{_forward_train.1} parent=1 // pred_region
      %s23 = ssub.s32 2048, 2048
      %24 = vsyncadd [#allocation5], %s23
      %s25 = sshll.u32 [#allocation4], 4
      %s26 = int_to_ptr.vmem [resolvable:$true] %s25
      %31 = dma.hbm_to_vmem [thread:$0]  %s2, 2048, %s26, [#allocation5], 128, 128, 8
    $region9: #{_forward_train.1} parent=1 // pred_fallthru
      _
    // Predicated region
    $region10: #{_forward_train.1} parent=1 // pred_check
      _
    $region11: #{_forward_train.1} parent=1 // pred_check_branch
      %33 = sbr.rel (0) target = $region13
    $region12: #{_forward_train.1} parent=1 // pred_region
      %34 = dma.done [#allocation5], 2048
    $region13: #{_forward_train.1} parent=1 // pred_fallthru
      _
    %s35 = smul.u32 0, 16
    loop: start=0, step=1, limit=16
    $region14: #{_forward_train.1} parent=1 // loop_pre_header
      _
    $region15: #{_forward_train.1} parent=1 // loop_header
      %s37 = sphi 0, %s41
      %p38 = scmp.ge.s32.totalorder %s37, 16
    $region16: #{_forward_train.1} parent=1 // loop_header_branch
      %40 = sbr.rel (%p38) target = $region20
    $region17: #{_forward_train.1} parent=1 // loop_body
      %s42 = sadd.s32 %s35, %s37
      %s43 = sld [smem:[#allocation3 + %s42]]
      %s44 = scalar_lea.vmem [#allocation4], %s43
      %v45 = vld [vmem:[%s44] sm:$0x1]
      %s46 = scalar_lea.vmem [#allocation7], %s37
      %47 = vst [vmem:[%s46] sm:$0x1] %v45
    $region18: #{_forward_train.1} parent=1 // loop_footer
      %s41 = sadd.s32 1, %s37
    $region19: #{_forward_train.1} parent=1 // loop_footer_branch
      %36 = sbr.rel target = $region15
    $region20: #{_forward_train.1} parent=1 // loop_exit
      _
    %v48 = vld [vmem:[#allocation7] sm:$0xff]
    %v49 = vld [vmem:[#allocation7 + $0x8] sm:$0xff]
    %v50 = vld [vmem:[%s1] sm:$0xff]
    %v51 = vld [vmem:[%s1 + $0x8] sm:$0xff]
    %v52 = vlaneseq
    %v53 = vand.u32 %v52, 127
    %54 = vmax.xlane.f32.xlu0 %v48
    %v55 = vpop.xlane.xlu0 %54
    %56 = vmax.xlane.f32.xlu0 %v49
    %v57 = vpop.xlane.xlu0 %56
    %v58 = vsub.f32 %v48, %v55
    %v59 = vsub.f32 %v49, %v57
    %v60 = vmul.f32 %v58, 1.442695
    %v61 = vpow.pop %v60
    %v62 = vmul.f32 %v59, 1.442695
    %v63 = vpow.pop %v62
    %64 = vadd.xlane.f32.xlu0 %v61
    %v65 = vpop.xlane.xlu0 %64
    %66 = vadd.xlane.f32.xlu0 %v63
    %v67 = vpop.xlane.xlu0 %66
    %v68 = vlog2.pop %v65
    %v69 = vmul.f32 %v68, 0.6931472
    %v70 = vlog2.pop %v67
    %v71 = vmul.f32 %v70, 0.6931472
    %v72 = vadd.f32 %v69, %v55
    %v73 = vadd.f32 %v71, %v57
    %74 = vset.pattern.permute.xlu0 0
    %75 = vperm.xlu0 %74, %v50
    %v76 = vpop.permute.xlu0 %75
    %77 = vset.pattern.permute.xlu0 0
    %78 = vperm.xlu0 %77, %v51
    %v79 = vpop.permute.xlu0 %78
    %vm80 = vcmp.eq.s32.totalorder %v53, %v76
    %vm81 = vcmp.eq.s32.totalorder %v53, %v79
    %v82 = vsel %vm80, %v48, 0.0
    %v83 = vsel %vm81, %v49, 0.0
    %84 = vadd.xlane.f32.xlu0 %v82
    %v85 = vpop.xlane.xlu0 %84
    %86 = vadd.xlane.f32.xlu0 %v83
    %v87 = vpop.xlane.xlu0 %86
    %v88 = vlaneseq
    %v89 = vshrl.u32 %v88, 7
    %v90 = vadd.s32 %v89, 8
    %v91 = vstv %s35
    %v92 = vadd.s32 %v91, %v89
    %v93 = vadd.s32 %v91, %v90
    %vm94 = vcmp.lt.s32.totalorder %v92, 16
    %vm95 = vcmp.lt.s32.totalorder %v93, 16
    %v96 = vsub.f32 %v72, %v85
    %v97 = vsub.f32 %v73, %v87
    %v98 = vsel %vm94, %v96, 0.0
    %v99 = vsel %vm95, %v97, 0.0
    %vm100 = vcmask 7168
    %101 = vst.msk [vmem:[%s4] sm:$0xff] %vm100, %v98
    %102 = vst.msk [vmem:[%s4 + $0x8] sm:$0xff] %vm100, %v99
    // Predicated region
    $region21: #{_forward_train.1} parent=1 // pred_check
      _
    $region22: #{_forward_train.1} parent=1 // pred_check_branch
      %104 = sbr.rel (0) target = $region24
    $region23: #{_forward_train.1} parent=1 // pred_region
      %s106 = ssub.s32 256, 256
      %107 = vsyncadd [#allocation6], %s106
      %s108 = sshll.u32 [#allocation7], 4
      %s109 = int_to_ptr.vmem [resolvable:$true] %s108
      %114 = dma.vmem_to_hbm [thread:$0]  %s109, 256, %s3, [#allocation6], 128, 128, 8
    $region24: #{_forward_train.1} parent=1 // pred_fallthru
      _
    // Predicated region
    $region25: #{_forward_train.1} parent=1 // pred_check
      _
    $region26: #{_forward_train.1} parent=1 // pred_check_branch
      %116 = sbr.rel (0) target = $region28
    $region27: #{_forward_train.1} parent=1 // pred_region
      _
    $region28: #{_forward_train.1} parent=1 // pred_fallthru
      _
    // Predicated region
    $region29: #{_forward_train.1} parent=1 // pred_check
      _
    $region30: #{_forward_train.1} parent=1 // pred_check_branch
      %118 = sbr.rel (0) target = $region32
    $region31: #{_forward_train.1} parent=1 // pred_region
      %119 = dma.done [#allocation6], 256
    $region32: #{_forward_train.1} parent=1 // pred_fallthru
      _
    // Predicated region
    $region33: #{_forward_train.1} parent=1 // pred_check
      _
    $region34: #{_forward_train.1} parent=1 // pred_check_branch
      %121 = sbr.rel (0) target = $region36
    $region35: #{_forward_train.1} parent=1 // pred_region
      _
    $region36: #{_forward_train.1} parent=1 // pred_fallthru
      _
    %122 = vsyncpa [#allocation5], 1
    %123 = vsyncpa [#allocation6], 1

</llo_original>
